<compile_context>
chip_gen: v7x
topology: tpu7x:2x2x1
jax: 0.10.0
libtpu: 0.0.40
codegen_flags: <defaults>
</compile_context>

<pallas_src>
import jax
import jax.numpy as jnp
from jax.experimental import pallas as pl
from jax.experimental.pallas import tpu as pltpu


def att_kernel(x_ref, w1_ref, b1_ref, w2_ref, b2_ref, y_ref):
    # x_ref: (TB, S, D) block of batch rows; y_ref: (TB, 1, D)
    TB, S, D = x_ref.shape
    H = w1_ref.shape[1]

    x = x_ref[...]                                   # (TB, S, D)
    x2 = x.reshape(TB * S, D)                        # TimeDistributed flatten: rows = TB*S

    # hidden = tanh(x @ W1 + b1) : one (TB*S, D) @ (D, H) MXU pass for all rows of the step
    h = jnp.tanh(
        jnp.dot(x2, w1_ref[...], preferred_element_type=jnp.float32)
        + b1_ref[...]                                # (1, H) broadcast
    )                                                # (TB*S, H)
    h3 = h.reshape(TB, S, H)                         # (TB, S, H)

    # scores, lane-major: (TB, 1, S).  Batched contraction over H puts the sequence axis in
    # lanes, so the softmax reductions below are lane reductions shared across TB rows.
    w2b = jnp.broadcast_to(w2_ref[...], (TB, 1, H))  # (1, H) -> (TB, 1, H)
    s = jnp.einsum("bih,bsh->bis", w2b, h3, preferred_element_type=jnp.float32)
    s = s + b2_ref[0, 0]                             # scalar bias from SMEM (cancels in softmax,
                                                     # kept for fidelity; costs one VPU add)

    # softmax over the sequence (last / lane axis)
    s = s - jnp.max(s, axis=-1, keepdims=True)
    e = jnp.exp(s)
    att = e * pl.reciprocal(jnp.sum(e, axis=-1, keepdims=True), approx=True)   # (TB, 1, S)

    # weighted sum over the sequence as a batched MXU contraction -> lane-dense (TB, 1, D)
    y_ref[...] = jnp.einsum("bis,bsd->bid", att, x, preferred_element_type=jnp.float32)


def att_layer(x, w1, b1, w2, b2, *, tb=8):
    """x: (B, S, D); w1: (D, H); b1: (1, H); w2: (H, 1); b2: (1, 1) -> (B, D)."""
    B, S, D = x.shape
    H = w1.shape[1]

    tb = min(tb, B)
    n_blocks = pl.cdiv(B, tb)
    b_pad = n_blocks * tb
    if b_pad != B:
        # Zero-padded rows are harmless: softmax over constant scores is uniform and the
        # weighted sum of zero rows is zero; they are sliced off below.
        x = jnp.pad(x, ((0, b_pad - B), (0, 0), (0, 0)))

    w2_row = w2.reshape(1, H).astype(jnp.float32)    # (H, 1) -> (1, H) row
    b2_s = b2.reshape(1, 1).astype(jnp.float32)      # SMEM scalar

    y = pl.pallas_call(
        att_kernel,
        out_shape=jax.ShapeDtypeStruct((b_pad, 1, D), jnp.float32),
        grid_spec=pltpu.PrefetchScalarGridSpec(
            num_scalar_prefetch=0,
            grid=(n_blocks,),
            in_specs=[
                pl.BlockSpec((tb, S, D), lambda i: (i, 0, 0)),          # x rows for this step
                pl.BlockSpec((D, H), lambda i: (0, 0)),                 # W1 (resident)
                pl.BlockSpec((1, H), lambda i: (0, 0)),                 # b1
                pl.BlockSpec((1, H), lambda i: (0, 0)),                 # w2 row
                pl.BlockSpec(memory_space=pltpu.MemorySpace.SMEM),      # b2 scalar in SMEM
            ],
            out_specs=pl.BlockSpec((tb, 1, D), lambda i: (i, 0, 0)),
        ),
        compiler_params=pltpu.CompilerParams(
            dimension_semantics=("parallel",),       # shards across TCs on v7x when n_blocks > 1
        ),
    )(x, w1, b1, w2_row, b2_s)

    return y.reshape(b_pad, D)[:B]


def att_layer_ref(x, w1, b1, w2, b2):
    # pure-JAX reference mirroring the PyTorch forward
    h = jnp.tanh(jnp.einsum("bsd,dh->bsh", x, w1) + b1)            # (B, S, H)
    s = jnp.einsum("bsh,ho->bso", h, w2)[..., 0] + b2[0, 0]        # (B, S)
    w = jax.nn.softmax(s, axis=-1)                                 # (B, S)
    return jnp.sum(x * w[:, :, None], axis=1)                      # (B, D)


if __name__ == "__main__":
    # Small shapes consistent with the module:
    #   batch B=2, sequence length S=8, word_emb_dim D=32, attention_hidden_dim H=16
    B, S, D, H = 2, 8, 32, 16

    key = jax.random.PRNGKey(0)
    kx, kw1, kb1, kw2, kb2 = jax.random.split(key, 5)

    x = jax.random.normal(kx, (B, S, D), dtype=jnp.float32)
    w1 = jax.random.normal(kw1, (D, H), dtype=jnp.float32) * 0.1   # Linear(D, H) weight
    b1 = jax.random.normal(kb1, (1, H), dtype=jnp.float32) * 0.1   # Linear(D, H) bias
    w2 = jax.random.normal(kw2, (H, 1), dtype=jnp.float32) * 0.1   # Linear(H, 1) weight
    b2 = jax.random.normal(kb2, (1, 1), dtype=jnp.float32) * 0.1   # Linear(H, 1) bias

    y = att_layer(x, w1, b1, w2, b2)
    y = jax.block_until_ready(y)

    y_ref = att_layer_ref(x, w1, b1, w2, b2)
    # Tolerance accounts for the approximate EUP reciprocal in the softmax normalization
    # (a uniform scale on the attention weights); with approx=False it matches at ~1e-6.
    assert jnp.allclose(y, y_ref, atol=1e-3, rtol=1e-3), "mismatch vs. JAX reference"

    print("KERNEL_OK")
</pallas_src>

<mosaic_0001>
module attributes {stable_mosaic.version = 11 : i64} {
  func.func @att_kernel(%arg0: i32, %arg1: memref<2x8x32xf32, #tpu.memory_space<vmem>>, %arg2: memref<32x16xf32, #tpu.memory_space<vmem>>, %arg3: memref<1x16xf32, #tpu.memory_space<vmem>>, %arg4: memref<1x16xf32, #tpu.memory_space<vmem>>, %arg5: memref<1x1xf32, #tpu.memory_space<smem>>, %arg6: memref<2x1x32xf32, #tpu.memory_space<vmem>>) attributes {dimension_semantics = [#tpu.dimension_semantics<parallel>], iteration_bounds = array<i64: 1>, scalar_prefetch = 0 : i64, scratch_operands = 0 : i64, tpu.core_type = #tpu.core_type<tc>, window_params = [{transform_indices = @transform_0, window_bounds = array<i64: 2, 8, 32>}, {pipeline_mode = #tpu.pipeline_mode<synchronous>, transform_indices = @transform_1, window_bounds = array<i64: 32, 16>}, {pipeline_mode = #tpu.pipeline_mode<synchronous>, transform_indices = @transform_2, window_bounds = array<i64: 1, 16>}, {pipeline_mode = #tpu.pipeline_mode<synchronous>, transform_indices = @transform_3, window_bounds = array<i64: 1, 16>}, {transform_indices = @transform_4, window_bounds = array<i64: 1, 1>}, {transform_indices = @transform_5, window_bounds = array<i64: 2, 1, 32>}]} {
    %c0 = arith.constant 0 : index
    %c0_0 = arith.constant 0 : index
    %c0_1 = arith.constant 0 : index
    %0 = vector.load %arg1[%c0, %c0_0, %c0_1] : memref<2x8x32xf32, #tpu.memory_space<vmem>>, vector<2x8x32xf32>
    %1 = vector.shape_cast %0 : vector<2x8x32xf32> to vector<16x32xf32>
    %c0_2 = arith.constant 0 : index
    %c0_3 = arith.constant 0 : index
    %2 = vector.load %arg2[%c0_2, %c0_3] : memref<32x16xf32, #tpu.memory_space<vmem>>, vector<32x16xf32>
    %cst = arith.constant dense<0.000000e+00> : vector<16x16xf32>
    %3 = tpu.matmul %1, %2, %cst {dimension_numbers = #tpu.dot_dimension_numbers<[1], [0], [0], [1], [0, 0, 1, 1], [], []>} : vector<16x32xf32>, vector<32x16xf32>, vector<16x16xf32> -> vector<16x16xf32>
    %c0_4 = arith.constant 0 : index
    %c0_5 = arith.constant 0 : index
    %4 = vector.load %arg3[%c0_4, %c0_5] : memref<1x16xf32, #tpu.memory_space<vmem>>, vector<1x16xf32>
    %5 = vector.broadcast %4 : vector<1x16xf32> to vector<16x16xf32>
    %6 = arith.addf %3, %5 : vector<16x16xf32>
    %7 = math.tanh %6 : vector<16x16xf32>
    %8 = vector.shape_cast %7 : vector<16x16xf32> to vector<2x8x16xf32>
    %c0_6 = arith.constant 0 : index
    %c0_7 = arith.constant 0 : index
    %9 = vector.load %arg4[%c0_6, %c0_7] : memref<1x16xf32, #tpu.memory_space<vmem>>, vector<1x16xf32>
    %10 = vector.shape_cast %9 : vector<1x16xf32> to vector<1x1x16xf32>
    %11 = vector.broadcast %10 : vector<1x1x16xf32> to vector<2x1x16xf32>
    "tpu.trace_start"() <{level = 10 : i32, message = "bih,bsh->bis"}> : () -> ()
    %cst_8 = arith.constant dense<0.000000e+00> : vector<2x1x8xf32>
    %12 = tpu.matmul %11, %8, %cst_8 {dimension_numbers = #tpu.dot_dimension_numbers<[2], [2], [1], [1], [0, 0, 0, 1, 1, 1], [0], [0]>} : vector<2x1x16xf32>, vector<2x8x16xf32>, vector<2x1x8xf32> -> vector<2x1x8xf32>
    "tpu.trace_stop"() : () -> ()
    %c0_9 = arith.constant 0 : index
    %c0_10 = arith.constant 0 : index
    %13 = memref.load %arg5[%c0_9, %c0_10] : memref<1x1xf32, #tpu.memory_space<smem>>
    %14 = vector.broadcast %13 : f32 to vector<2x1x8xf32>
    %15 = arith.addf %12, %14 : vector<2x1x8xf32>
    %cst_11 = arith.constant dense<0xFF800000> : vector<2x1xf32>
    %16 = vector.multi_reduction <maximumf>, %15, %cst_11 [2] : vector<2x1x8xf32> to vector<2x1xf32>
    %17 = vector.shape_cast %16 : vector<2x1xf32> to vector<2x1x1xf32>
    %18 = vector.broadcast %17 : vector<2x1x1xf32> to vector<2x1x8xf32>
    %19 = arith.subf %15, %18 : vector<2x1x8xf32>
    %20 = math.exp %19 : vector<2x1x8xf32>
    %cst_12 = arith.constant dense<0.000000e+00> : vector<2x1xf32>
    %21 = vector.multi_reduction <add>, %20, %cst_12 [2] : vector<2x1x8xf32> to vector<2x1xf32>
    %22 = vector.shape_cast %21 : vector<2x1xf32> to vector<2x1x1xf32>
    %23 = tpu.reciprocal %22 {approx = true} : vector<2x1x1xf32> -> vector<2x1x1xf32>
    %24 = vector.broadcast %23 : vector<2x1x1xf32> to vector<2x1x8xf32>
    %25 = arith.mulf %20, %24 : vector<2x1x8xf32>
    "tpu.trace_start"() <{level = 10 : i32, message = "bis,bsd->bid"}> : () -> ()
    %cst_13 = arith.constant dense<0.000000e+00> : vector<2x1x32xf32>
    %26 = tpu.matmul %25, %0, %cst_13 {dimension_numbers = #tpu.dot_dimension_numbers<[2], [1], [1], [2], [0, 0, 0, 1, 1, 2], [0], [0]>} : vector<2x1x8xf32>, vector<2x8x32xf32>, vector<2x1x32xf32> -> vector<2x1x32xf32>
    "tpu.trace_stop"() : () -> ()
    %c0_14 = arith.constant 0 : index
    %c0_15 = arith.constant 0 : index
    %c0_16 = arith.constant 0 : index
    %27 = vector.load %arg6[%c0_14, %c0_15, %c0_16] : memref<2x1x32xf32, #tpu.memory_space<vmem>>, vector<2x1x32xf32>
    tpu.vector_store %arg6[%c0_14, %c0_15, %c0_16], %26 {strides = array<i32>} : memref<2x1x32xf32, #tpu.memory_space<vmem>>, vector<2x1x32xf32>,
    return
  }
  func.func @transform_0(%arg0: i32) -> (i32, i32, i32) {
    %c0_i32 = arith.constant 0 : i32
    %c0_i32_0 = arith.constant 0 : i32
    %c0_i32_1 = arith.constant 0 : i32
    return %arg0, %c0_i32, %c0_i32_0 : i32, i32, i32
  }
  func.func @transform_1(%arg0: i32) -> (i32, i32) {
    %c0_i32 = arith.constant 0 : i32
    %c0_i32_0 = arith.constant 0 : i32
    %c0_i32_1 = arith.constant 0 : i32
    return %c0_i32, %c0_i32_0 : i32, i32
  }
  func.func @transform_2(%arg0: i32) -> (i32, i32) {
    %c0_i32 = arith.constant 0 : i32
    %c0_i32_0 = arith.constant 0 : i32
    %c0_i32_1 = arith.constant 0 : i32
    return %c0_i32, %c0_i32_0 : i32, i32
  }
  func.func @transform_3(%arg0: i32) -> (i32, i32) {
    %c0_i32 = arith.constant 0 : i32
    %c0_i32_0 = arith.constant 0 : i32
    %c0_i32_1 = arith.constant 0 : i32
    return %c0_i32, %c0_i32_0 : i32, i32
  }
  func.func @transform_4(%arg0: i32) -> (i32, i32) {
    %c0_i32 = arith.constant 0 : i32
    %c0_i32_0 = arith.constant 0 : i32
    %c0_i32_1 = arith.constant 0 : i32
    return %c0_i32, %c0_i32_0 : i32, i32
  }
  func.func @transform_5(%arg0: i32) -> (i32, i32, i32) {
    %c0_i32 = arith.constant 0 : i32
    %c0_i32_0 = arith.constant 0 : i32
    %c0_i32_1 = arith.constant 0 : i32
    return %arg0, %c0_i32, %c0_i32_0 : i32, i32, i32
  }
}

</mosaic_0001>

<llo_original>
// kernel: tpu_custom_call.1
$region0: #{tpu_custom_call.1}
  #allocation0 [shape = 'u32[]', space=smem, size = 0x4, offset = 0x4, fixed_abs, tag = 'smem constant byte address 0x4 - core index']
  #allocation1 [shape = 'u32[144,128]{1,0:T(1,128)}', space=vmem, size = 0x12000, scoped, tag = 'internal scratch']
  #allocation2 [shape = 'f32[1,1]{1,0:T(1,128)S(6)}', space=smem, size = 0x200, scoped, tag = 'scoped memory for tpu_custom_call.1']
  %s0 = inlined_call_operand.vmem [shape: f32[2,8,32], index: 0, kind: input, shape index: {}]
  %s1 = inlined_call_operand.vmem [shape: f32[32,16], index: 1, kind: input, shape index: {}]
  %s2 = inlined_call_operand.vmem [shape: f32[1,16], index: 2, kind: input, shape index: {}]
  %s3 = inlined_call_operand.vmem [shape: f32[1,16], index: 3, kind: input, shape index: {}]
  %s4 = inlined_call_operand.<no memory space> [shape: f32[1,1], index: 4, kind: input, shape index: {}]
  %s5 = inlined_call_operand.hbm [shape: f32[2,1,32], index: 5, kind: output, shape index: {}]
  %s6 = sld [smem:[#allocation0]]
  $region30: #{tpu_custom_call.1} parent=0
    _
  %s8 = ssub.s32 1, %s6
  %s9 = scalar_select 0, %s8, %s6
  %10 = sst [smem:[#allocation2]] %s4
  $region1: #{tpu_custom_call.1} parent=0
    #allocation3 [shape = 'u8[1024]{0}', space=vmem, size = 0x400, scoped, tag = 'output window, operand 0, single buffered']
    #allocation4 [shape = 's32[1]{0}', space=sflag, size = 0x4, scoped, tag = 'scoped memory for tpu_custom_call.1']
    %11 = vsyncpa [#allocation4], 0
    // Predicated region
    $region2: #{tpu_custom_call.1} parent=1 // pred_check
      _
    $region3: #{tpu_custom_call.1} parent=1 // pred_check_branch
      %13 = sbr.rel (0) target = $region5
    $region4: #{tpu_custom_call.1} parent=1 // pred_region
      _
    $region5: #{tpu_custom_call.1} parent=1 // pred_fallthru
      _
    // Predicated region
    $region6: #{tpu_custom_call.1} parent=1 // pred_check
      _
    $region7: #{tpu_custom_call.1} parent=1 // pred_check_branch
      %15 = sbr.rel (0) target = $region9
    $region8: #{tpu_custom_call.1} parent=1 // pred_region
      _
    $region9: #{tpu_custom_call.1} parent=1 // pred_fallthru
      _
    // Predicated region
    $region10: #{tpu_custom_call.1} parent=1 // pred_check
      _
    $region11: #{tpu_custom_call.1} parent=1 // pred_check_branch
      %17 = sbr.rel (0) target = $region13
    $region12: #{tpu_custom_call.1} parent=1 // pred_region
      _
    $region13: #{tpu_custom_call.1} parent=1 // pred_fallthru
      _
    // Predicated region
    $region14: #{tpu_custom_call.1} parent=1 // pred_check
      _
    $region15: #{tpu_custom_call.1} parent=1 // pred_check_branch
      %19 = sbr.rel (0) target = $region17
    $region16: #{tpu_custom_call.1} parent=1 // pred_region
      _
    $region17: #{tpu_custom_call.1} parent=1 // pred_fallthru
      _
    // Predicated region
    $region18: #{tpu_custom_call.1} parent=1 // pred_check
      _
    $region19: #{tpu_custom_call.1} parent=1 // pred_check_branch
      %21 = sbr.rel (0) target = $region21
    $region20: #{tpu_custom_call.1} parent=1 // pred_region
      _
    $region21: #{tpu_custom_call.1} parent=1 // pred_fallthru
      _
    %v22 = vld [vmem:[%s0] sm:$0xff]
    %v23 = vld [vmem:[%s0 + $0x8] sm:$0xff]
    %v24 = vld [vmem:[%s1] sm:$0xff]
    %v25 = vld [vmem:[%s1 + $0x8] sm:$0xff]
    %v26 = vld [vmem:[%s1 + $0x10] sm:$0xff]
    %v27 = vld [vmem:[%s1 + $0x18] sm:$0xff]
    %v28 = vld [vmem:[%s2] sm:$0x1]
    %v30 = vlaneseq
    %v31 = vshrl.u32 %v30, 7
    %v32 = vsub.s32 0, %v31
    %v33 = vrot.slane %v28, %v32
    %vm35 = vcmask 261120
    %v37 = vsel %vm35, %v22, 0
    %v40 = vsel %vm35, %v23, 0
    %42 = vmatprep.subr.mxu0 0.0
    %43 = vmatpush1.msra.mxu0 %v24
    %44 = vmatprep.subr.mxu0 0.0
    %45 = vmatpush1.msra.mxu0 %v25
    %46 = vmatprep.subr.mxu0 0.0
    %47 = vmatpush1.msra.mxu0 %v26
    %48 = vmatprep.subr.mxu0 0.0
    %49 = vmatpush1.msra.mxu0 %v27
    %50 = vmatprep.subr.mxu0 0.0
    %51 = vmatpush1.msra.mxu0 0.0
    %52 = vmatprep.subr.mxu0 0.0
    %53 = vmatpush1.msra.mxu0 0.0
    %54 = vmatprep.subr.mxu0 0.0
    %55 = vmatpush1.msra.mxu0 0.0
    %56 = vmatprep.subr.mxu0 0.0
    %57 = vmatpush1.msra.mxu0 0.0
    %58 = vmatprep.subr.mxu0 0.0
    %59 = vmatpush1.msra.mxu0 0.0
    %60 = vmatprep.subr.mxu0 0.0
    %61 = vmatpush1.msra.mxu0 0.0
    %62 = vmatprep.subr.mxu0 0.0
    %63 = vmatpush1.msra.mxu0 0.0
    %64 = vmatprep.subr.mxu0 0.0
    %65 = vmatpush1.msra.mxu0 0.0
    %66 = vmatprep.subr.mxu0 0.0
    %67 = vmatpush1.msra.mxu0 0.0
    %68 = vmatprep.subr.mxu0 0.0
    %69 = vmatpush1.msra.mxu0 0.0
    %70 = vmatprep.subr.mxu0 0.0
    %71 = vmatpush1.msra.mxu0 0.0
    %72 = vmatprep.subr.mxu0 0.0
    %73 = vmatpush1.msra.mxu0 0.0
    %74 = vmatprep.subr.mxu0 0.0
    %75 = vmatpush1.msra.mxu0 0.0
    %76 = vmatprep.subr.mxu0 0.0
    %77 = vmatpush1.msra.mxu0 0.0
    %78 = vmatprep.subr.mxu0 0.0
    %79 = vmatpush1.msra.mxu0 0.0
    %80 = vmatprep.subr.mxu0 0.0
    %81 = vmatpush1.msra.mxu0 0.0
    %82 = vmatprep.subr.mxu0 0.0
    %83 = vmatpush1.msra.mxu0 0.0
    %84 = vmatprep.subr.mxu0 0.0
    %85 = vmatpush1.msra.mxu0 0.0
    %86 = vmatprep.subr.mxu0 0.0
    %87 = vmatpush1.msra.mxu0 0.0
    %88 = vmatprep.subr.mxu0 0.0
    %89 = vmatpush1.msra.mxu0 0.0
    %90 = vmatprep.subr.mxu0 0.0
    %91 = vmatpush1.msra.mxu0 0.0
    %92 = vmatprep.subr.mxu0 0.0
    %93 = vmatpush1.msra.mxu0 0.0
    %94 = vmatprep.subr.mxu0 0.0
    %95 = vmatpush1.msra.mxu0 0.0
    %96 = vmatprep.subr.mxu0 0.0
    %97 = vmatpush1.msra.mxu0 0.0
    %98 = vmatprep.subr.mxu0 0.0
    %99 = vmatpush1.msra.mxu0 0.0
    %100 = vmatprep.subr.mxu0 0.0
    %101 = vmatpush1.msra.mxu0 0.0
    %102 = vmatprep.subr.mxu0 0.0
    %103 = vmatpush1.msra.mxu0 0.0
    %104 = vmatprep.subr.mxu0 0.0
    %105 = vmatpush1.msra.mxu0 0.0
    %106 = vmatprep.mubr.f32.mxu0 0.0
    %107 = vmatmul.mubr.f32.gmra.mrb[0].mxu0 %v37
    %v108 = vpop.f32.mrb[0].mxu0
    %v109 = vadd.f32 %v33, %v108
    %v110 = vpop.f32.mrb[0].mxu0
    %111 = vmatprep.mubr.f32.mxu0 0.0
    %112 = vmatmul.mubr.f32.gmra.mrb[0].mxu0 %v40
    %v113 = vpop.f32.mrb[0].mxu0
    %v114 = vadd.f32 %v33, %v113
    %v115 = vpop.f32.mrb[0].mxu0
    %116 = vdwg.mxu0
    %v117 = vtanh.pop %v109
    %v118 = vtanh.pop %v114
    %v119 = vld [vmem:[%s3] sm:$0x1]
    %s120 = sld [smem:[#allocation2]]
    %v121 = vstv %s120
    %vm122 = vcmask 130048
    %v124 = vsel %vm122, %v119, 0
    %v127 = vsel %vm122, %v117, 0
    %129 = vmatprep.subr.mxu0 0.0
    %130 = vmatpush1.xpose.msra.mxu0 %v127
    %131 = vmatprep.subr.mxu0 0.0
    %132 = vmatpush1.xpose.msra.mxu0 0.0
    %133 = vmatprep.subr.mxu0 0.0
    %134 = vmatpush1.xpose.msra.mxu0 0.0
    %135 = vmatprep.subr.mxu0 0.0
    %136 = vmatpush1.xpose.msra.mxu0 0.0
    %137 = vmatprep.subr.mxu0 0.0
    %138 = vmatpush1.xpose.msra.mxu0 0.0
    %139 = vmatprep.subr.mxu0 0.0
    %140 = vmatpush1.xpose.msra.mxu0 0.0
    %141 = vmatprep.subr.mxu0 0.0
    %142 = vmatpush1.xpose.msra.mxu0 0.0
    %143 = vmatprep.subr.mxu0 0.0
    %144 = vmatpush1.xpose.msra.mxu0 0.0
    %145 = vmatprep.subr.mxu0 0.0
    %146 = vmatpush1.xpose.msra.mxu0 0.0
    %147 = vmatprep.subr.mxu0 0.0
    %148 = vmatpush1.xpose.msra.mxu0 0.0
    %149 = vmatprep.subr.mxu0 0.0
    %150 = vmatpush1.xpose.msra.mxu0 0.0
    %151 = vmatprep.subr.mxu0 0.0
    %152 = vmatpush1.xpose.msra.mxu0 0.0
    %153 = vmatprep.subr.mxu0 0.0
    %154 = vmatpush1.xpose.msra.mxu0 0.0
    %155 = vmatprep.subr.mxu0 0.0
    %156 = vmatpush1.xpose.msra.mxu0 0.0
    %157 = vmatprep.subr.mxu0 0.0
    %158 = vmatpush1.xpose.msra.mxu0 0.0
    %159 = vmatprep.subr.mxu0 0.0
    %160 = vmatpush1.xpose.msra.mxu0 0.0
    %161 = vmatprep.subr.mxu0 0.0
    %162 = vmatpush1.xpose.msra.mxu0 0.0
    %163 = vmatprep.subr.mxu0 0.0
    %164 = vmatpush1.xpose.msra.mxu0 0.0
    %165 = vmatprep.subr.mxu0 0.0
    %166 = vmatpush1.xpose.msra.mxu0 0.0
    %167 = vmatprep.subr.mxu0 0.0
    %168 = vmatpush1.xpose.msra.mxu0 0.0
    %169 = vmatprep.subr.mxu0 0.0
    %170 = vmatpush1.xpose.msra.mxu0 0.0
    %171 = vmatprep.subr.mxu0 0.0
    %172 = vmatpush1.xpose.msra.mxu0 0.0
    %173 = vmatprep.subr.mxu0 0.0
    %174 = vmatpush1.xpose.msra.mxu0 0.0
    %175 = vmatprep.subr.mxu0 0.0
    %176 = vmatpush1.xpose.msra.mxu0 0.0
    %177 = vmatprep.subr.mxu0 0.0
    %178 = vmatpush1.xpose.msra.mxu0 0.0
    %179 = vmatprep.subr.mxu0 0.0
    %180 = vmatpush1.xpose.msra.mxu0 0.0
    %181 = vmatprep.subr.mxu0 0.0
    %182 = vmatpush1.xpose.msra.mxu0 0.0
    %183 = vmatprep.subr.mxu0 0.0
    %184 = vmatpush1.xpose.msra.mxu0 0.0
    %185 = vmatprep.subr.mxu0 0.0
    %186 = vmatpush1.xpose.msra.mxu0 0.0
    %187 = vmatprep.subr.mxu0 0.0
    %188 = vmatpush1.xpose.msra.mxu0 0.0
    %189 = vmatprep.subr.mxu0 0.0
    %190 = vmatpush1.xpose.msra.mxu0 0.0
    %191 = vmatprep.subr.mxu0 0.0
    %192 = vmatpush1.xpose.msra.mxu0 0.0
    %193 = vmatprep.mubr.f32.mxu0 0.0
    %194 = vmatmul.mubr.f32.gmra.mrb[0].mxu0 %v124
    %v195 = vpop.f32.mrb[0].mxu0
    %v196 = vadd.f32 %v121, %v195
    %v197 = vpop.f32.mrb[0].mxu0
    %198 = vdwg.mxu0
    %v200 = vsel %vm122, %v118, 0
    %202 = vmatprep.subr.mxu0 0.0
    %203 = vmatpush1.xpose.msra.mxu0 %v200
    %204 = vmatprep.subr.mxu0 0.0
    %205 = vmatpush1.xpose.msra.mxu0 0.0
    %206 = vmatprep.subr.mxu0 0.0
    %207 = vmatpush1.xpose.msra.mxu0 0.0
    %208 = vmatprep.subr.mxu0 0.0
    %209 = vmatpush1.xpose.msra.mxu0 0.0
    %210 = vmatprep.subr.mxu0 0.0
    %211 = vmatpush1.xpose.msra.mxu0 0.0
    %212 = vmatprep.subr.mxu0 0.0
    %213 = vmatpush1.xpose.msra.mxu0 0.0
    %214 = vmatprep.subr.mxu0 0.0
    %215 = vmatpush1.xpose.msra.mxu0 0.0
    %216 = vmatprep.subr.mxu0 0.0
    %217 = vmatpush1.xpose.msra.mxu0 0.0
    %218 = vmatprep.subr.mxu0 0.0
    %219 = vmatpush1.xpose.msra.mxu0 0.0
    %220 = vmatprep.subr.mxu0 0.0
    %221 = vmatpush1.xpose.msra.mxu0 0.0
    %222 = vmatprep.subr.mxu0 0.0
    %223 = vmatpush1.xpose.msra.mxu0 0.0
    %224 = vmatprep.subr.mxu0 0.0
    %225 = vmatpush1.xpose.msra.mxu0 0.0
    %226 = vmatprep.subr.mxu0 0.0
    %227 = vmatpush1.xpose.msra.mxu0 0.0
    %228 = vmatprep.subr.mxu0 0.0
    %229 = vmatpush1.xpose.msra.mxu0 0.0
    %230 = vmatprep.subr.mxu0 0.0
    %231 = vmatpush1.xpose.msra.mxu0 0.0
    %232 = vmatprep.subr.mxu0 0.0
    %233 = vmatpush1.xpose.msra.mxu0 0.0
    %234 = vmatprep.subr.mxu0 0.0
    %235 = vmatpush1.xpose.msra.mxu0 0.0
    %236 = vmatprep.subr.mxu0 0.0
    %237 = vmatpush1.xpose.msra.mxu0 0.0
    %238 = vmatprep.subr.mxu0 0.0
    %239 = vmatpush1.xpose.msra.mxu0 0.0
    %240 = vmatprep.subr.mxu0 0.0
    %241 = vmatpush1.xpose.msra.mxu0 0.0
    %242 = vmatprep.subr.mxu0 0.0
    %243 = vmatpush1.xpose.msra.mxu0 0.0
    %244 = vmatprep.subr.mxu0 0.0
    %245 = vmatpush1.xpose.msra.mxu0 0.0
    %246 = vmatprep.subr.mxu0 0.0
    %247 = vmatpush1.xpose.msra.mxu0 0.0
    %248 = vmatprep.subr.mxu0 0.0
    %249 = vmatpush1.xpose.msra.mxu0 0.0
    %250 = vmatprep.subr.mxu0 0.0
    %251 = vmatpush1.xpose.msra.mxu0 0.0
    %252 = vmatprep.subr.mxu0 0.0
    %253 = vmatpush1.xpose.msra.mxu0 0.0
    %254 = vmatprep.subr.mxu0 0.0
    %255 = vmatpush1.xpose.msra.mxu0 0.0
    %256 = vmatprep.subr.mxu0 0.0
    %257 = vmatpush1.xpose.msra.mxu0 0.0
    %258 = vmatprep.subr.mxu0 0.0
    %259 = vmatpush1.xpose.msra.mxu0 0.0
    %260 = vmatprep.subr.mxu0 0.0
    %261 = vmatpush1.xpose.msra.mxu0 0.0
    %262 = vmatprep.subr.mxu0 0.0
    %263 = vmatpush1.xpose.msra.mxu0 0.0
    %264 = vmatprep.subr.mxu0 0.0
    %265 = vmatpush1.xpose.msra.mxu0 0.0
    %266 = vmatprep.mubr.f32.mxu0 0.0
    %267 = vmatmul.mubr.f32.gmra.mrb[0].mxu0 %v124
    %v268 = vpop.f32.mrb[0].mxu0
    %v269 = vadd.f32 %v121, %v268
    %v270 = vpop.f32.mrb[0].mxu0
    %271 = vdwg.mxu0
    %vm272 = vcmask 57344
    %v273 = vsel %vm272, %v196, -inf
    %274 = vmax.xlane.f32.xlu0 %v273
    %v275 = vpop.xlane.xlu0 %274
    %v276 = vsel %vm272, %v269, -inf
    %277 = vmax.xlane.f32.xlu0 %v276
    %v278 = vpop.xlane.xlu0 %277
    %v279 = vsub.f32 %v196, %v275
    %v280 = vsub.f32 %v269, %v278
    %v281 = vmul.f32 %v279, 1.442695
    %v282 = vpow.pop %v281
    %v283 = vmul.f32 %v280, 1.442695
    %v284 = vpow.pop %v283
    %v285 = vsel %vm272, %v282, 0.0
    %286 = vadd.xlane.f32.xlu0 %v285
    %v287 = vpop.xlane.xlu0 %286
    %v288 = vsel %vm272, %v284, 0.0
    %289 = vadd.xlane.f32.xlu0 %v288
    %v290 = vpop.xlane.xlu0 %289
    %v291 = vrcp.pop %v287
    %v292 = vrcp.pop %v290
    %v293 = vmul.f32 %v282, %v291
    %v294 = vmul.f32 %v284, %v292
    %vm295 = vcmask 64512
    %v297 = vsel %vm295, %v293, 0
    %299 = vmatprep.subr.mxu0 0.0
    %300 = vmatpush1.msra.mxu0 %v22
    %301 = vmatprep.subr.mxu0 0.0
    %302 = vmatpush1.msra.mxu0 0.0
    %303 = vmatprep.subr.mxu0 0.0
    %304 = vmatpush1.msra.mxu0 0.0
    %305 = vmatprep.subr.mxu0 0.0
    %306 = vmatpush1.msra.mxu0 0.0
    %307 = vmatprep.subr.mxu0 0.0
    %308 = vmatpush1.msra.mxu0 0.0
    %309 = vmatprep.subr.mxu0 0.0
    %310 = vmatpush1.msra.mxu0 0.0
    %311 = vmatprep.subr.mxu0 0.0
    %312 = vmatpush1.msra.mxu0 0.0
    %313 = vmatprep.subr.mxu0 0.0
    %314 = vmatpush1.msra.mxu0 0.0
    %315 = vmatprep.subr.mxu0 0.0
    %316 = vmatpush1.msra.mxu0 0.0
    %317 = vmatprep.subr.mxu0 0.0
    %318 = vmatpush1.msra.mxu0 0.0
    %319 = vmatprep.subr.mxu0 0.0
    %320 = vmatpush1.msra.mxu0 0.0
    %321 = vmatprep.subr.mxu0 0.0
    %322 = vmatpush1.msra.mxu0 0.0
    %323 = vmatprep.subr.mxu0 0.0
    %324 = vmatpush1.msra.mxu0 0.0
    %325 = vmatprep.subr.mxu0 0.0
    %326 = vmatpush1.msra.mxu0 0.0
    %327 = vmatprep.subr.mxu0 0.0
    %328 = vmatpush1.msra.mxu0 0.0
    %329 = vmatprep.subr.mxu0 0.0
    %330 = vmatpush1.msra.mxu0 0.0
    %331 = vmatprep.subr.mxu0 0.0
    %332 = vmatpush1.msra.mxu0 0.0
    %333 = vmatprep.subr.mxu0 0.0
    %334 = vmatpush1.msra.mxu0 0.0
    %335 = vmatprep.subr.mxu0 0.0
    %336 = vmatpush1.msra.mxu0 0.0
    %337 = vmatprep.subr.mxu0 0.0
    %338 = vmatpush1.msra.mxu0 0.0
    %339 = vmatprep.subr.mxu0 0.0
    %340 = vmatpush1.msra.mxu0 0.0
    %341 = vmatprep.subr.mxu0 0.0
    %342 = vmatpush1.msra.mxu0 0.0
    %343 = vmatprep.subr.mxu0 0.0
    %344 = vmatpush1.msra.mxu0 0.0
    %345 = vmatprep.subr.mxu0 0.0
    %346 = vmatpush1.msra.mxu0 0.0
    %347 = vmatprep.subr.mxu0 0.0
    %348 = vmatpush1.msra.mxu0 0.0
    %349 = vmatprep.subr.mxu0 0.0
    %350 = vmatpush1.msra.mxu0 0.0
    %351 = vmatprep.subr.mxu0 0.0
    %352 = vmatpush1.msra.mxu0 0.0
    %353 = vmatprep.subr.mxu0 0.0
    %354 = vmatpush1.msra.mxu0 0.0
    %355 = vmatprep.subr.mxu0 0.0
    %356 = vmatpush1.msra.mxu0 0.0
    %357 = vmatprep.subr.mxu0 0.0
    %358 = vmatpush1.msra.mxu0 0.0
    %359 = vmatprep.subr.mxu0 0.0
    %360 = vmatpush1.msra.mxu0 0.0
    %361 = vmatprep.subr.mxu0 0.0
    %362 = vmatpush1.msra.mxu0 0.0
    %363 = vmatprep.mubr.f32.mxu0 0.0
    %364 = vmatmul.mubr.f32.gmra.mrb[0].mxu0 %v297
    %v365 = vpop.f32.mrb[0].mxu0
    %v366 = vadd.f32 0.0, %v365
    %v367 = vpop.f32.mrb[0].mxu0
    %368 = vdwg.mxu0
    %v370 = vsel %vm295, %v294, 0
    %372 = vmatprep.subr.mxu0 0.0
    %373 = vmatpush1.msra.mxu0 %v23
    %374 = vmatprep.subr.mxu0 0.0
    %375 = vmatpush1.msra.mxu0 0.0
    %376 = vmatprep.subr.mxu0 0.0
    %377 = vmatpush1.msra.mxu0 0.0
    %378 = vmatprep.subr.mxu0 0.0
    %379 = vmatpush1.msra.mxu0 0.0
    %380 = vmatprep.subr.mxu0 0.0
    %381 = vmatpush1.msra.mxu0 0.0
    %382 = vmatprep.subr.mxu0 0.0
    %383 = vmatpush1.msra.mxu0 0.0
    %384 = vmatprep.subr.mxu0 0.0
    %385 = vmatpush1.msra.mxu0 0.0
    %386 = vmatprep.subr.mxu0 0.0
    %387 = vmatpush1.msra.mxu0 0.0
    %388 = vmatprep.subr.mxu0 0.0
    %389 = vmatpush1.msra.mxu0 0.0
    %390 = vmatprep.subr.mxu0 0.0
    %391 = vmatpush1.msra.mxu0 0.0
    %392 = vmatprep.subr.mxu0 0.0
    %393 = vmatpush1.msra.mxu0 0.0
    %394 = vmatprep.subr.mxu0 0.0
    %395 = vmatpush1.msra.mxu0 0.0
    %396 = vmatprep.subr.mxu0 0.0
    %397 = vmatpush1.msra.mxu0 0.0
    %398 = vmatprep.subr.mxu0 0.0
    %399 = vmatpush1.msra.mxu0 0.0
    %400 = vmatprep.subr.mxu0 0.0
    %401 = vmatpush1.msra.mxu0 0.0
    %402 = vmatprep.subr.mxu0 0.0
    %403 = vmatpush1.msra.mxu0 0.0
    %404 = vmatprep.subr.mxu0 0.0
    %405 = vmatpush1.msra.mxu0 0.0
    %406 = vmatprep.subr.mxu0 0.0
    %407 = vmatpush1.msra.mxu0 0.0
    %408 = vmatprep.subr.mxu0 0.0
    %409 = vmatpush1.msra.mxu0 0.0
    %410 = vmatprep.subr.mxu0 0.0
    %411 = vmatpush1.msra.mxu0 0.0
    %412 = vmatprep.subr.mxu0 0.0
    %413 = vmatpush1.msra.mxu0 0.0
    %414 = vmatprep.subr.mxu0 0.0
    %415 = vmatpush1.msra.mxu0 0.0
    %416 = vmatprep.subr.mxu0 0.0
    %417 = vmatpush1.msra.mxu0 0.0
    %418 = vmatprep.subr.mxu0 0.0
    %419 = vmatpush1.msra.mxu0 0.0
    %420 = vmatprep.subr.mxu0 0.0
    %421 = vmatpush1.msra.mxu0 0.0
    %422 = vmatprep.subr.mxu0 0.0
    %423 = vmatpush1.msra.mxu0 0.0
    %424 = vmatprep.subr.mxu0 0.0
    %425 = vmatpush1.msra.mxu0 0.0
    %426 = vmatprep.subr.mxu0 0.0
    %427 = vmatpush1.msra.mxu0 0.0
    %428 = vmatprep.subr.mxu0 0.0
    %429 = vmatpush1.msra.mxu0 0.0
    %430 = vmatprep.subr.mxu0 0.0
    %431 = vmatpush1.msra.mxu0 0.0
    %432 = vmatprep.subr.mxu0 0.0
    %433 = vmatpush1.msra.mxu0 0.0
    %434 = vmatprep.subr.mxu0 0.0
    %435 = vmatpush1.msra.mxu0 0.0
    %436 = vmatprep.mubr.f32.mxu0 0.0
    %437 = vmatmul.mubr.f32.gmra.mrb[0].mxu0 %v370
    %v438 = vpop.f32.mrb[0].mxu0
    %v439 = vadd.f32 0.0, %v438
    %v440 = vpop.f32.mrb[0].mxu0
    %441 = vdwg.mxu0
    %vm442 = vcmask 253952
    %443 = vst.msk [vmem:[#allocation3] sm:$0x1] %vm442, %v366
    %444 = vst.msk [vmem:[#allocation3 + $0x1] sm:$0x1] %vm442, %v439
    // Predicated region
    $region22: #{tpu_custom_call.1} parent=1 // pred_check
      _
    $region23: #{tpu_custom_call.1} parent=1 // pred_check_branch
      %446 = sbr.rel (0) target = $region25
    $region24: #{tpu_custom_call.1} parent=1 // pred_region
      %s448 = ssub.s32 32, 32
      %449 = vsyncadd [#allocation4], %s448
      %s450 = sshll.u32 [#allocation3], 4
      %s451 = int_to_ptr.vmem [resolvable:$true] %s450
      %456 = dma.vmem_to_hbm [thread:$0]  %s451, 32, %s5, [#allocation4], 16, 16, 1
    $region25: #{tpu_custom_call.1} parent=1 // pred_fallthru
      _
    // Predicated region
    $region26: #{tpu_custom_call.1} parent=1 // pred_check
      _
    $region27: #{tpu_custom_call.1} parent=1 // pred_check_branch
      %458 = sbr.rel (0) target = $region29
    $region28: #{tpu_custom_call.1} parent=1 // pred_region
      %459 = dma.done [#allocation4], 32
    $region29: #{tpu_custom_call.1} parent=1 // pred_fallthru
      _
    %460 = vsyncpa [#allocation4], 1

</llo_original>
